<compile_context>
chip_gen: v6e
topology: v6e:2x2x1
jax: 0.10.0
libtpu: 0.0.40
codegen_flags: <defaults>
</compile_context>

<pallas_src>
import functools

import jax
import jax.numpy as jnp
from jax import lax
from jax.experimental import pallas as pl
from jax.experimental.pallas import tpu as pltpu


def qvalue_kernel(x_ref, w1_ref, b1_ref, w2_ref, b2_ref, w3_ref, b3_ref, o_ref):
    """One batch tile.  x_ref is (bt, D_in) exactly as stored in HBM (no wrapper transpose).

    h1  = relu(W1 @ x^T + b1)    (H, bt)   MXU (trans_b contraction), f32 accumulate
    h2  = relu(W2 @ h1  + b2)    (H, bt)   MXU, f32 accumulate
    out = sum_h(h2 * w3) + b3    (1, bt)   VPU mul + sublane reduce (no N=1 MXU pass)
    """
    x_t = x_ref[...].astype(w1_ref.dtype)            # in-kernel cast to MXU dtype (no-op for f32)
    # fc1: contract over D_in of both operands -> (H, bt); Mosaic handles the transposed RHS,
    # avoiding any HBM-side transposed copy of x.
    h1 = lax.dot_general(
        w1_ref[...], x_t,
        dimension_numbers=(((1,), (1,)), ((), ())),
        preferred_element_type=jnp.float32)
    # Layer-1 bias+ReLU in the elementwise dtype carried by b1 (bf16 on v6e/v7x, f32 on v5e).
    h1 = jnp.maximum(h1.astype(b1_ref.dtype) + b1_ref[...], 0.0)
    h1 = h1.astype(w2_ref.dtype)                     # no-op when ew_dtype == mxu_dtype
    h2 = jnp.dot(w2_ref[...], h1, preferred_element_type=jnp.float32)
    h2 = jnp.maximum(h2 + b2_ref[...], 0.0)          # (H, bt) f32
    # fc_out: elementwise multiply by the (H, 1) weight column, reduce over sublanes.
    row = jnp.sum(h2 * w3_ref[...], axis=0, keepdims=True)     # (1, bt) lane-dense
    o_ref[...] = (row + b3_ref[0]).astype(o_ref.dtype)


def prepare_params(torch_params, mxu_dtype=jnp.float32, ew_dtype=None):
    """One-time parameter prep (hoisted out of the per-call forward).

    torch_params (PyTorch (out, in) layout): w1 (H, D_in), b1 (H,), w2 (H, H), b2 (H,),
    w3 (1, H), b3 (1,).
      mxu_dtype: matmul operand dtype.  bf16 recommended on v5e/v6e/v7x; f32 if accuracy-critical.
      ew_dtype : layer-1 bias/ReLU dtype.  bf16 on v6e/v7x (bf16 VPU), f32 on v5e. Default f32.
    """
    if ew_dtype is None:
        ew_dtype = jnp.float32
    H = torch_params["w1"].shape[0]
    return {
        "w1": torch_params["w1"].astype(mxu_dtype),                # (H, D_in)
        "b1": torch_params["b1"].reshape(H, 1).astype(ew_dtype),   # column, lane-broadcast
        "w2": torch_params["w2"].astype(mxu_dtype),                # (H, H)
        "b2": torch_params["b2"].reshape(H, 1).astype(jnp.float32),
        "w3": torch_params["w3"].reshape(H, 1).astype(jnp.float32),  # (H, 1) column
        "b3": torch_params["b3"].reshape(1).astype(jnp.float32),     # SMEM scalar
    }


def _round_up(v, m):
    return (v + m - 1) // m * m


@functools.partial(jax.jit, static_argnames=("batch_tile", "core_parallel"))
def qvalue_forward(x, prepared, batch_tile=1024, core_parallel=False):
    """x: (B, D_in) f32.  prepared: output of prepare_params.  Returns (B, 1) f32.

    batch_tile: batch columns per grid step (capped at round_up(B, 128)).  On v7x, pick
    batch_tile ~ B/2 or B/4 and pass core_parallel=True so both TensorCores get work.
    """
    B, D_in = x.shape
    H = prepared["w2"].shape[0]

    bt = _round_up(min(batch_tile, _round_up(B, 128)), 128)
    n_tiles = pl.cdiv(B, bt)
    B_pad = n_tiles * bt
    if B_pad != B:
        # Row-only zero pad of the last ragged tile; no transpose / dtype copy of x.
        x = jnp.pad(x, ((0, B_pad - B), (0, 0)))

    dim_sem = (pltpu.CORE_PARALLEL,) if core_parallel else ("parallel",)

    out_row = pl.pallas_call(
        qvalue_kernel,
        out_shape=jax.ShapeDtypeStruct((1, B_pad), jnp.float32),
        grid=(n_tiles,),
        in_specs=[
            # activations: tiled over the batch (sublane) axis, layout as stored in HBM
            pl.BlockSpec((bt, D_in), lambda i: (i, 0)),
            # parameters: full arrays, VMEM-resident across all grid steps
            pl.BlockSpec((H, D_in), lambda i: (0, 0)),
            pl.BlockSpec((H, 1), lambda i: (0, 0)),
            pl.BlockSpec((H, H), lambda i: (0, 0)),
            pl.BlockSpec((H, 1), lambda i: (0, 0)),
            pl.BlockSpec((H, 1), lambda i: (0, 0)),
            # b3: single scalar in SMEM (avoids a padded VMEM tile + DMA)
            pl.BlockSpec(memory_space=pltpu.MemorySpace.SMEM),
        ],
        # lane-dense (1, bt) output row -> unmasked vector stores
        out_specs=pl.BlockSpec((1, bt), lambda i: (0, i)),
        compiler_params=pltpu.CompilerParams(dimension_semantics=dim_sem),
    )(x, prepared["w1"], prepared["b1"], prepared["w2"], prepared["b2"],
      prepared["w3"], prepared["b3"])

    return out_row[0, :B].reshape(B, 1)


def init_params(key, input_dim, hidden_dim):
    """PyTorch nn.Linear default init: U(-1/sqrt(fan_in), 1/sqrt(fan_in)); (out, in) layout."""
    ks = jax.random.split(key, 6)

    def lin(kw, kb, fan_in, fan_out):
        bound = 1.0 / jnp.sqrt(fan_in)
        w = jax.random.uniform(kw, (fan_out, fan_in), jnp.float32, -bound, bound)
        b = jax.random.uniform(kb, (fan_out,), jnp.float32, -bound, bound)
        return w, b

    w1, b1 = lin(ks[0], ks[1], input_dim, hidden_dim)
    w2, b2 = lin(ks[2], ks[3], hidden_dim, hidden_dim)
    w3, b3 = lin(ks[4], ks[5], hidden_dim, 1)
    return {"w1": w1, "b1": b1, "w2": w2, "b2": b2, "w3": w3, "b3": b3}


def qvalue_ref(x, params):
    """Pure-JAX reference mirroring the PyTorch forward."""
    h = jnp.maximum(x @ params["w1"].T + params["b1"], 0.0)
    h = jnp.maximum(h @ params["w2"].T + params["b2"], 0.0)
    return h @ params["w3"].T + params["b3"]


if __name__ == "__main__":
    input_dim = 32      # e.g. concat(all states, all actions) for the MADDPG critic
    hidden_dim = 128
    batch = 48          # ragged batch -> exercises the row-pad / slice path

    key = jax.random.PRNGKey(0)
    kx, kp = jax.random.split(key)
    x = jax.random.normal(kx, (batch, input_dim), jnp.float32)
    params = init_params(kp, input_dim, hidden_dim)
    ref = qvalue_ref(x, params)

    # Full-f32 path (accuracy-critical)
    p_f32 = prepare_params(params, jnp.float32, jnp.float32)
    out_f32 = jax.block_until_ready(qvalue_forward(x, p_f32))
    assert out_f32.shape == (batch, 1)
    assert jnp.allclose(out_f32, ref, atol=2e-4, rtol=2e-4), "f32 mismatch vs reference"

    # v5e fast path: bf16 MXU operands, f32 elementwise (no bf16 VPU on v5e)
    p_v5e = prepare_params(params, jnp.bfloat16, jnp.float32)
    out_v5e = jax.block_until_ready(qvalue_forward(x, p_v5e))
    assert jnp.allclose(out_v5e, ref, atol=5e-2, rtol=5e-2), "bf16-MXU mismatch vs reference"

    # v6e / v7x fast path: bf16 MXU operands + bf16 layer-1 bias/ReLU (f32 accumulate kept)
    p_v6e = prepare_params(params, jnp.bfloat16, jnp.bfloat16)
    out_v6e = jax.block_until_ready(qvalue_forward(x, p_v6e))
    assert jnp.allclose(out_v6e, ref, atol=1e-1, rtol=5e-2), "bf16 mismatch vs reference"

    # Multi-tile grid (small tile override) on a ragged batch
    batch2 = 300
    x2 = jax.random.normal(jax.random.PRNGKey(1), (batch2, input_dim), jnp.float32)
    out2 = jax.block_until_ready(qvalue_forward(x2, p_f32, batch_tile=128))
    assert out2.shape == (batch2, 1)
    assert jnp.allclose(out2, qvalue_ref(x2, params), atol=2e-4, rtol=2e-4), \
        "multi-tile mismatch vs reference"

    # Default large tile, batch an exact multiple -> no pad, 2 grid steps
    batch3 = 2048
    x3 = jax.random.normal(jax.random.PRNGKey(2), (batch3, input_dim), jnp.float32)
    out3 = jax.block_until_ready(qvalue_forward(x3, p_f32))
    assert out3.shape == (batch3, 1)
    assert jnp.allclose(out3, qvalue_ref(x3, params), atol=2e-4, rtol=2e-4), \
        "large-batch mismatch vs reference"

    print("KERNEL_OK")
</pallas_src>

<mosaic_0001>
module attributes {stable_mosaic.version = 11 : i64} {
  func.func @qvalue_kernel(%arg0: i32, %arg1: memref<128x32xf32, #tpu.memory_space<vmem>>, %arg2: memref<128x32xf32, #tpu.memory_space<vmem>>, %arg3: memref<128x1xf32, #tpu.memory_space<vmem>>, %arg4: memref<128x128xf32, #tpu.memory_space<vmem>>, %arg5: memref<128x1xf32, #tpu.memory_space<vmem>>, %arg6: memref<128x1xf32, #tpu.memory_space<vmem>>, %arg7: memref<1xf32, #tpu.memory_space<smem>>, %arg8: memref<1x128xf32, #tpu.memory_space<vmem>>) attributes {dimension_semantics = [#tpu.dimension_semantics<parallel>], iteration_bounds = array<i64: 1>, scalar_prefetch = 0 : i64, scratch_operands = 0 : i64, tpu.core_type = #tpu.core_type<tc>, window_params = [{transform_indices = @transform_0, window_bounds = array<i64: 128, 32>}, {pipeline_mode = #tpu.pipeline_mode<synchronous>, transform_indices = @transform_1, window_bounds = array<i64: 128, 32>}, {pipeline_mode = #tpu.pipeline_mode<synchronous>, transform_indices = @transform_2, window_bounds = array<i64: 128, 1>}, {pipeline_mode = #tpu.pipeline_mode<synchronous>, transform_indices = @transform_3, window_bounds = array<i64: 128, 128>}, {pipeline_mode = #tpu.pipeline_mode<synchronous>, transform_indices = @transform_4, window_bounds = array<i64: 128, 1>}, {pipeline_mode = #tpu.pipeline_mode<synchronous>, transform_indices = @transform_5, window_bounds = array<i64: 128, 1>}, {transform_indices = @transform_6, window_bounds = array<i64: 1>}, {transform_indices = @transform_7, window_bounds = array<i64: 1, 128>}]} {
    %c0 = arith.constant 0 : index
    %c0_0 = arith.constant 0 : index
    %0 = vector.load %arg1[%c0, %c0_0] : memref<128x32xf32, #tpu.memory_space<vmem>>, vector<128x32xf32>
    %c0_1 = arith.constant 0 : index
    %c0_2 = arith.constant 0 : index
    %1 = vector.load %arg2[%c0_1, %c0_2] : memref<128x32xf32, #tpu.memory_space<vmem>>, vector<128x32xf32>
    %cst = arith.constant dense<0.000000e+00> : vector<128x128xf32>
    %2 = tpu.matmul %1, %0, %cst {dimension_numbers = #tpu.dot_dimension_numbers<[1], [1], [0], [0], [0, 0, 1, 0], [], []>} : vector<128x32xf32>, vector<128x32xf32>, vector<128x128xf32> -> vector<128x128xf32>
    %c0_3 = arith.constant 0 : index
    %c0_4 = arith.constant 0 : index
    %3 = vector.load %arg3[%c0_3, %c0_4] : memref<128x1xf32, #tpu.memory_space<vmem>>, vector<128x1xf32>
    %4 = vector.broadcast %3 : vector<128x1xf32> to vector<128x128xf32>
    %5 = arith.addf %2, %4 : vector<128x128xf32>
    %cst_5 = arith.constant 0.000000e+00 : f32
    %6 = vector.broadcast %cst_5 : f32 to vector<128x128xf32>
    %7 = arith.maximumf %5, %6 : vector<128x128xf32>
    %c0_6 = arith.constant 0 : index
    %c0_7 = arith.constant 0 : index
    %8 = vector.load %arg4[%c0_6, %c0_7] : memref<128x128xf32, #tpu.memory_space<vmem>>, vector<128x128xf32>
    %cst_8 = arith.constant dense<0.000000e+00> : vector<128x128xf32>
    %9 = tpu.matmul %8, %7, %cst_8 {dimension_numbers = #tpu.dot_dimension_numbers<[1], [0], [0], [1], [0, 0, 1, 1], [], []>} : vector<128x128xf32>, vector<128x128xf32>, vector<128x128xf32> -> vector<128x128xf32>
    %c0_9 = arith.constant 0 : index
    %c0_10 = arith.constant 0 : index
    %10 = vector.load %arg5[%c0_9, %c0_10] : memref<128x1xf32, #tpu.memory_space<vmem>>, vector<128x1xf32>
    %11 = vector.broadcast %10 : vector<128x1xf32> to vector<128x128xf32>
    %12 = arith.addf %9, %11 : vector<128x128xf32>
    %cst_11 = arith.constant 0.000000e+00 : f32
    %13 = vector.broadcast %cst_11 : f32 to vector<128x128xf32>
    %14 = arith.maximumf %12, %13 : vector<128x128xf32>
    %c0_12 = arith.constant 0 : index
    %c0_13 = arith.constant 0 : index
    %15 = vector.load %arg6[%c0_12, %c0_13] : memref<128x1xf32, #tpu.memory_space<vmem>>, vector<128x1xf32>
    %16 = vector.broadcast %15 : vector<128x1xf32> to vector<128x128xf32>
    %17 = arith.mulf %14, %16 : vector<128x128xf32>
    %cst_14 = arith.constant dense<0.000000e+00> : vector<128xf32>
    %18 = vector.multi_reduction <add>, %17, %cst_14 [0] : vector<128x128xf32> to vector<128xf32>
    %19 = vector.shape_cast %18 : vector<128xf32> to vector<1x128xf32>
    %c0_15 = arith.constant 0 : index
    %20 = memref.load %arg7[%c0_15] : memref<1xf32, #tpu.memory_space<smem>>
    %21 = vector.broadcast %20 : f32 to vector<1x128xf32>
    %22 = arith.addf %19, %21 : vector<1x128xf32>
    %c0_16 = arith.constant 0 : index
    %c0_17 = arith.constant 0 : index
    %23 = vector.load %arg8[%c0_16, %c0_17] : memref<1x128xf32, #tpu.memory_space<vmem>>, vector<1x128xf32>
    tpu.vector_store %arg8[%c0_16, %c0_17], %22 {strides = array<i32>} : memref<1x128xf32, #tpu.memory_space<vmem>>, vector<1x128xf32>,
    return
  }
  func.func @transform_0(%arg0: i32) -> (i32, i32) {
    %c0_i32 = arith.constant 0 : i32
    %c0_i32_0 = arith.constant 0 : i32
    return %arg0, %c0_i32 : i32, i32
  }
  func.func @transform_1(%arg0: i32) -> (i32, i32) {
    %c0_i32 = arith.constant 0 : i32
    %c0_i32_0 = arith.constant 0 : i32
    %c0_i32_1 = arith.constant 0 : i32
    return %c0_i32, %c0_i32_0 : i32, i32
  }
  func.func @transform_2(%arg0: i32) -> (i32, i32) {
    %c0_i32 = arith.constant 0 : i32
    %c0_i32_0 = arith.constant 0 : i32
    %c0_i32_1 = arith.constant 0 : i32
    return %c0_i32, %c0_i32_0 : i32, i32
  }
  func.func @transform_3(%arg0: i32) -> (i32, i32) {
    %c0_i32 = arith.constant 0 : i32
    %c0_i32_0 = arith.constant 0 : i32
    %c0_i32_1 = arith.constant 0 : i32
    return %c0_i32, %c0_i32_0 : i32, i32
  }
  func.func @transform_4(%arg0: i32) -> (i32, i32) {
    %c0_i32 = arith.constant 0 : i32
    %c0_i32_0 = arith.constant 0 : i32
    %c0_i32_1 = arith.constant 0 : i32
    return %c0_i32, %c0_i32_0 : i32, i32
  }
  func.func @transform_5(%arg0: i32) -> (i32, i32) {
    %c0_i32 = arith.constant 0 : i32
    %c0_i32_0 = arith.constant 0 : i32
    %c0_i32_1 = arith.constant 0 : i32
    return %c0_i32, %c0_i32_0 : i32, i32
  }
  func.func @transform_6(%arg0: i32) -> i32 {
    %c0_i32 = arith.constant 0 : i32
    %c0_i32_0 = arith.constant 0 : i32
    return %c0_i32 : i32
  }
  func.func @transform_7(%arg0: i32) -> (i32, i32) {
    %c0_i32 = arith.constant 0 : i32
    %c0_i32_0 = arith.constant 0 : i32
    return %c0_i32, %arg0 : i32, i32
  }
}

</mosaic_0001>

<llo_original>
// kernel: qvalue_forward.1
$region0: #{qvalue_forward.1}
  #allocation0 [shape = 'u32[]', space=smem, size = 0x4, offset = 0x4, fixed_abs, tag = 'smem constant byte address 0x4 - core index']
  #allocation1 [shape = 'u32[144,128]{1,0:T(1,128)}', space=vmem, size = 0x12000, scoped, tag = 'internal scratch']
  #allocation2 [shape = 'f32[1]{0:T(128)S(6)}', space=smem, size = 0x200, scoped, tag = 'scoped memory for qvalue_forward.1']
  %s0 = inlined_call_operand.vmem [shape: f32[128,32], index: 0, kind: input, shape index: {}]
  %s1 = inlined_call_operand.vmem [shape: f32[128,32], index: 1, kind: input, shape index: {}]
  %s2 = inlined_call_operand.vmem [shape: f32[128,1], index: 2, kind: input, shape index: {}]
  %s3 = inlined_call_operand.vmem [shape: f32[128,128], index: 3, kind: input, shape index: {}]
  %s4 = inlined_call_operand.vmem [shape: f32[128,1], index: 4, kind: input, shape index: {}]
  %s5 = inlined_call_operand.vmem [shape: f32[128,1], index: 5, kind: input, shape index: {}]
  %s6 = inlined_call_operand.<no memory space> [shape: f32[1], index: 6, kind: input, shape index: {}]
  %s7 = inlined_call_operand.vmem [shape: f32[1,128], index: 7, kind: output, shape index: {}]
  %s8 = sld [smem:[#allocation0]]
  $region38: #{qvalue_forward.1} parent=0
    _
  %s10 = ssub.s32 1, %s8
  %s11 = scalar_select 0, %s10, %s8
  %12 = sst [smem:[#allocation2]] %s6
  // Predicated region
  $region2: #{qvalue_forward.1} parent=0 // pred_check
    _
  $region3: #{qvalue_forward.1} parent=0 // pred_check_branch
    %14 = sbr.rel (0) target = $region5
  $region4: #{qvalue_forward.1} parent=0 // pred_region
    _
  $region5: #{qvalue_forward.1} parent=0 // pred_fallthru
    _
  // Predicated region
  $region6: #{qvalue_forward.1} parent=0 // pred_check
    _
  $region7: #{qvalue_forward.1} parent=0 // pred_check_branch
    %16 = sbr.rel (0) target = $region9
  $region8: #{qvalue_forward.1} parent=0 // pred_region
    _
  $region9: #{qvalue_forward.1} parent=0 // pred_fallthru
    _
  // Predicated region
  $region10: #{qvalue_forward.1} parent=0 // pred_check
    _
  $region11: #{qvalue_forward.1} parent=0 // pred_check_branch
    %18 = sbr.rel (0) target = $region13
  $region12: #{qvalue_forward.1} parent=0 // pred_region
    _
  $region13: #{qvalue_forward.1} parent=0 // pred_fallthru
    _
  // Predicated region
  $region14: #{qvalue_forward.1} parent=0 // pred_check
    _
  $region15: #{qvalue_forward.1} parent=0 // pred_check_branch
    %20 = sbr.rel (0) target = $region17
  $region16: #{qvalue_forward.1} parent=0 // pred_region
    _
  $region17: #{qvalue_forward.1} parent=0 // pred_fallthru
    _
  // Predicated region
  $region18: #{qvalue_forward.1} parent=0 // pred_check
    _
  $region19: #{qvalue_forward.1} parent=0 // pred_check_branch
    %22 = sbr.rel (0) target = $region21
  $region20: #{qvalue_forward.1} parent=0 // pred_region
    _
  $region21: #{qvalue_forward.1} parent=0 // pred_fallthru
    _
  // Predicated region
  $region22: #{qvalue_forward.1} parent=0 // pred_check
    _
  $region23: #{qvalue_forward.1} parent=0 // pred_check_branch
    %24 = sbr.rel (0) target = $region25
  $region24: #{qvalue_forward.1} parent=0 // pred_region
    _
  $region25: #{qvalue_forward.1} parent=0 // pred_fallthru
    _
  // Predicated region
  $region26: #{qvalue_forward.1} parent=0 // pred_check
    _
  $region27: #{qvalue_forward.1} parent=0 // pred_check_branch
    %26 = sbr.rel (0) target = $region29
  $region28: #{qvalue_forward.1} parent=0 // pred_region
    _
  $region29: #{qvalue_forward.1} parent=0 // pred_fallthru
    _
  %v27 = vld [vmem:[%s0] sm:$0xff]
  %v28 = vld [vmem:[%s0 + $0x8] sm:$0xff]
  %v29 = vld [vmem:[%s0 + $0x10] sm:$0xff]
  %v30 = vld [vmem:[%s0 + $0x18] sm:$0xff]
  %v31 = vld [vmem:[%s0 + $0x20] sm:$0xff]
  %v32 = vld [vmem:[%s0 + $0x28] sm:$0xff]
  %v33 = vld [vmem:[%s0 + $0x30] sm:$0xff]
  %v34 = vld [vmem:[%s0 + $0x38] sm:$0xff]
  %v35 = vld [vmem:[%s0 + $0x40] sm:$0xff]
  %v36 = vld [vmem:[%s0 + $0x48] sm:$0xff]
  %v37 = vld [vmem:[%s0 + $0x50] sm:$0xff]
  %v38 = vld [vmem:[%s0 + $0x58] sm:$0xff]
  %v39 = vld [vmem:[%s0 + $0x60] sm:$0xff]
  %v40 = vld [vmem:[%s0 + $0x68] sm:$0xff]
  %v41 = vld [vmem:[%s0 + $0x70] sm:$0xff]
  %v42 = vld [vmem:[%s0 + $0x78] sm:$0xff]
  %v43 = vld [vmem:[%s1] sm:$0xff]
  %v44 = vld [vmem:[%s1 + $0x8] sm:$0xff]
  %v45 = vld [vmem:[%s1 + $0x10] sm:$0xff]
  %v46 = vld [vmem:[%s1 + $0x18] sm:$0xff]
  %v47 = vld [vmem:[%s1 + $0x20] sm:$0xff]
  %v48 = vld [vmem:[%s1 + $0x28] sm:$0xff]
  %v49 = vld [vmem:[%s1 + $0x30] sm:$0xff]
  %v50 = vld [vmem:[%s1 + $0x38] sm:$0xff]
  %v51 = vld [vmem:[%s1 + $0x40] sm:$0xff]
  %v52 = vld [vmem:[%s1 + $0x48] sm:$0xff]
  %v53 = vld [vmem:[%s1 + $0x50] sm:$0xff]
  %v54 = vld [vmem:[%s1 + $0x58] sm:$0xff]
  %v55 = vld [vmem:[%s1 + $0x60] sm:$0xff]
  %v56 = vld [vmem:[%s1 + $0x68] sm:$0xff]
  %v57 = vld [vmem:[%s1 + $0x70] sm:$0xff]
  %v58 = vld [vmem:[%s1 + $0x78] sm:$0xff]
  %v59 = vld [vmem:[%s2] sm:$0xff]
  %v60 = vld [vmem:[%s2 + $0x8] sm:$0xff]
  %v61 = vld [vmem:[%s2 + $0x10] sm:$0xff]
  %v62 = vld [vmem:[%s2 + $0x18] sm:$0xff]
  %v63 = vld [vmem:[%s2 + $0x20] sm:$0xff]
  %v64 = vld [vmem:[%s2 + $0x28] sm:$0xff]
  %v65 = vld [vmem:[%s2 + $0x30] sm:$0xff]
  %v66 = vld [vmem:[%s2 + $0x38] sm:$0xff]
  %v67 = vld [vmem:[%s2 + $0x40] sm:$0xff]
  %v68 = vld [vmem:[%s2 + $0x48] sm:$0xff]
  %v69 = vld [vmem:[%s2 + $0x50] sm:$0xff]
  %v70 = vld [vmem:[%s2 + $0x58] sm:$0xff]
  %v71 = vld [vmem:[%s2 + $0x60] sm:$0xff]
  %v72 = vld [vmem:[%s2 + $0x68] sm:$0xff]
  %v73 = vld [vmem:[%s2 + $0x70] sm:$0xff]
  %v74 = vld [vmem:[%s2 + $0x78] sm:$0xff]
  %76 = vset.pattern.permute.xlu0 0
  %77 = vperm.xlu0 %76, %v59
  %v78 = vpop.permute.xlu0 %77
  %81 = vset.pattern.permute.xlu0 0
  %82 = vperm.xlu0 %81, %v60
  %v83 = vpop.permute.xlu0 %82
  %86 = vset.pattern.permute.xlu0 0
  %87 = vperm.xlu0 %86, %v61
  %v88 = vpop.permute.xlu0 %87
  %91 = vset.pattern.permute.xlu0 0
  %92 = vperm.xlu0 %91, %v62
  %v93 = vpop.permute.xlu0 %92
  %96 = vset.pattern.permute.xlu0 0
  %97 = vperm.xlu0 %96, %v63
  %v98 = vpop.permute.xlu0 %97
  %101 = vset.pattern.permute.xlu0 0
  %102 = vperm.xlu0 %101, %v64
  %v103 = vpop.permute.xlu0 %102
  %106 = vset.pattern.permute.xlu0 0
  %107 = vperm.xlu0 %106, %v65
  %v108 = vpop.permute.xlu0 %107
  %111 = vset.pattern.permute.xlu0 0
  %112 = vperm.xlu0 %111, %v66
  %v113 = vpop.permute.xlu0 %112
  %116 = vset.pattern.permute.xlu0 0
  %117 = vperm.xlu0 %116, %v67
  %v118 = vpop.permute.xlu0 %117
  %121 = vset.pattern.permute.xlu0 0
  %122 = vperm.xlu0 %121, %v68
  %v123 = vpop.permute.xlu0 %122
  %126 = vset.pattern.permute.xlu0 0
  %127 = vperm.xlu0 %126, %v69
  %v128 = vpop.permute.xlu0 %127
  %131 = vset.pattern.permute.xlu0 0
  %132 = vperm.xlu0 %131, %v70
  %v133 = vpop.permute.xlu0 %132
  %136 = vset.pattern.permute.xlu0 0
  %137 = vperm.xlu0 %136, %v71
  %v138 = vpop.permute.xlu0 %137
  %141 = vset.pattern.permute.xlu0 0
  %142 = vperm.xlu0 %141, %v72
  %v143 = vpop.permute.xlu0 %142
  %146 = vset.pattern.permute.xlu0 0
  %147 = vperm.xlu0 %146, %v73
  %v148 = vpop.permute.xlu0 %147
  %151 = vset.pattern.permute.xlu0 0
  %152 = vperm.xlu0 %151, %v74
  %v153 = vpop.permute.xlu0 %152
  %vm155 = vcmask 261120
  %v157 = vsel %vm155, %v43, 0
  %v160 = vsel %vm155, %v44, 0
  %v163 = vsel %vm155, %v45, 0
  %v166 = vsel %vm155, %v46, 0
  %v169 = vsel %vm155, %v47, 0
  %v172 = vsel %vm155, %v48, 0
  %v175 = vsel %vm155, %v49, 0
  %v178 = vsel %vm155, %v50, 0
  %v181 = vsel %vm155, %v51, 0
  %v184 = vsel %vm155, %v52, 0
  %v187 = vsel %vm155, %v53, 0
  %v190 = vsel %vm155, %v54, 0
  %v193 = vsel %vm155, %v55, 0
  %v196 = vsel %vm155, %v56, 0
  %v199 = vsel %vm155, %v57, 0
  %v202 = vsel %vm155, %v58, 0
  %v205 = vsel %vm155, %v27, 0
  %v208 = vsel %vm155, %v28, 0
  %v211 = vsel %vm155, %v29, 0
  %v214 = vsel %vm155, %v30, 0
  %v217 = vsel %vm155, %v31, 0
  %v220 = vsel %vm155, %v32, 0
  %v223 = vsel %vm155, %v33, 0
  %v226 = vsel %vm155, %v34, 0
  %v229 = vsel %vm155, %v35, 0
  %v232 = vsel %vm155, %v36, 0
  %v235 = vsel %vm155, %v37, 0
  %v238 = vsel %vm155, %v38, 0
  %v241 = vsel %vm155, %v39, 0
  %v244 = vsel %vm155, %v40, 0
  %v247 = vsel %vm155, %v41, 0
  %v250 = vsel %vm155, %v42, 0
  %252 = vmatprep.subr.mxu0 0.0
  %253 = vmatpush1.xpose.msra.mxu0 %v250
  %254 = vmatprep.subr.mxu0 0.0
  %255 = vmatpush1.xpose.msra.mxu0 %v247
  %256 = vmatprep.subr.mxu0 0.0
  %257 = vmatpush1.xpose.msra.mxu0 %v244
  %258 = vmatprep.subr.mxu0 0.0
  %259 = vmatpush1.xpose.msra.mxu0 %v241
  %260 = vmatprep.subr.mxu0 0.0
  %261 = vmatpush1.xpose.msra.mxu0 %v238
  %262 = vmatprep.subr.mxu0 0.0
  %263 = vmatpush1.xpose.msra.mxu0 %v235
  %264 = vmatprep.subr.mxu0 0.0
  %265 = vmatpush1.xpose.msra.mxu0 %v232
  %266 = vmatprep.subr.mxu0 0.0
  %267 = vmatpush1.xpose.msra.mxu0 %v229
  %268 = vmatprep.subr.mxu0 0.0
  %269 = vmatpush1.xpose.msra.mxu0 %v226
  %270 = vmatprep.subr.mxu0 0.0
  %271 = vmatpush1.xpose.msra.mxu0 %v223
  %272 = vmatprep.subr.mxu0 0.0
  %273 = vmatpush1.xpose.msra.mxu0 %v220
  %274 = vmatprep.subr.mxu0 0.0
  %275 = vmatpush1.xpose.msra.mxu0 %v217
  %276 = vmatprep.subr.mxu0 0.0
  %277 = vmatpush1.xpose.msra.mxu0 %v214
  %278 = vmatprep.subr.mxu0 0.0
  %279 = vmatpush1.xpose.msra.mxu0 %v211
  %280 = vmatprep.subr.mxu0 0.0
  %281 = vmatpush1.xpose.msra.mxu0 %v208
  %282 = vmatprep.subr.mxu0 0.0
  %283 = vmatpush1.xpose.msra.mxu0 %v205
  %284 = vmatprep.subr.mxu0 0.0
  %285 = vmatpush2.xpose.msra.mxu0 0.0
  %286 = vmatprep.subr.mxu0 0.0
  %287 = vmatpush2.xpose.msra.mxu0 0.0
  %288 = vmatprep.subr.mxu0 0.0
  %289 = vmatpush2.xpose.msra.mxu0 0.0
  %290 = vmatprep.subr.mxu0 0.0
  %291 = vmatpush2.xpose.msra.mxu0 0.0
  %292 = vmatprep.subr.mxu0 0.0
  %293 = vmatpush2.xpose.msra.mxu0 0.0
  %294 = vmatprep.subr.mxu0 0.0
  %295 = vmatpush2.xpose.msra.mxu0 0.0
  %296 = vmatprep.subr.mxu0 0.0
  %297 = vmatpush2.xpose.msra.mxu0 0.0
  %298 = vmatprep.subr.mxu0 0.0
  %299 = vmatpush2.xpose.msra.mxu0 0.0
  %300 = vmatprep.subr.mxu0 0.0
  %301 = vmatpush2.xpose.msra.mxu0 0.0
  %302 = vmatprep.subr.mxu0 0.0
  %303 = vmatpush2.xpose.msra.mxu0 0.0
  %304 = vmatprep.subr.mxu0 0.0
  %305 = vmatpush2.xpose.msra.mxu0 0.0
  %306 = vmatprep.subr.mxu0 0.0
  %307 = vmatpush2.xpose.msra.mxu0 0.0
  %308 = vmatprep.subr.mxu0 0.0
  %309 = vmatpush2.xpose.msra.mxu0 0.0
  %310 = vmatprep.subr.mxu0 0.0
  %311 = vmatpush2.xpose.msra.mxu0 0.0
  %312 = vmatprep.subr.mxu0 0.0
  %313 = vmatpush2.xpose.msra.mxu0 0.0
  %314 = vmatprep.subr.mxu0 0.0
  %315 = vmatpush2.xpose.msra.mxu0 0.0
  %316 = vmatprep.mubr.f32.mxu0 0.0
  %317 = vmatmul.mubr.f32.gmra.mxu0 %v157
  %v318 = vpop.f32.mrf.mxu0
  %v319 = vadd.f32 %v78, %v318
  %v320 = vpop.f32.mrf.mxu0
  %321 = vmatprep.mubr.f32.mxu0 0.0
  %322 = vmatmul.mubr.f32.gmra.mxu0 %v160
  %v323 = vpop.f32.mrf.mxu0
  %v324 = vadd.f32 %v83, %v323
  %v325 = vpop.f32.mrf.mxu0
  %326 = vmatprep.mubr.f32.mxu0 0.0
  %327 = vmatmul.mubr.f32.gmra.mxu0 %v163
  %v328 = vpop.f32.mrf.mxu0
  %v329 = vadd.f32 %v88, %v328
  %v330 = vpop.f32.mrf.mxu0
  %331 = vmatprep.mubr.f32.mxu0 0.0
  %332 = vmatmul.mubr.f32.gmra.mxu0 %v166
  %v333 = vpop.f32.mrf.mxu0
  %v334 = vadd.f32 %v93, %v333
  %v335 = vpop.f32.mrf.mxu0
  %336 = vmatprep.mubr.f32.mxu0 0.0
  %337 = vmatmul.mubr.f32.gmra.mxu0 %v169
  %v338 = vpop.f32.mrf.mxu0
  %v339 = vadd.f32 %v98, %v338
  %v340 = vpop.f32.mrf.mxu0
  %341 = vmatprep.mubr.f32.mxu0 0.0
  %342 = vmatmul.mubr.f32.gmra.mxu0 %v172
  %v343 = vpop.f32.mrf.mxu0
  %v344 = vadd.f32 %v103, %v343
  %v345 = vpop.f32.mrf.mxu0
  %346 = vmatprep.mubr.f32.mxu0 0.0
  %347 = vmatmul.mubr.f32.gmra.mxu0 %v175
  %v348 = vpop.f32.mrf.mxu0
  %v349 = vadd.f32 %v108, %v348
  %v350 = vpop.f32.mrf.mxu0
  %351 = vmatprep.mubr.f32.mxu0 0.0
  %352 = vmatmul.mubr.f32.gmra.mxu0 %v178
  %v353 = vpop.f32.mrf.mxu0
  %v354 = vadd.f32 %v113, %v353
  %v355 = vpop.f32.mrf.mxu0
  %356 = vmatprep.mubr.f32.mxu0 0.0
  %357 = vmatmul.mubr.f32.gmra.mxu0 %v181
  %v358 = vpop.f32.mrf.mxu0
  %v359 = vadd.f32 %v118, %v358
  %v360 = vpop.f32.mrf.mxu0
  %361 = vmatprep.mubr.f32.mxu0 0.0
  %362 = vmatmul.mubr.f32.gmra.mxu0 %v184
  %v363 = vpop.f32.mrf.mxu0
  %v364 = vadd.f32 %v123, %v363
  %v365 = vpop.f32.mrf.mxu0
  %366 = vmatprep.mubr.f32.mxu0 0.0
  %367 = vmatmul.mubr.f32.gmra.mxu0 %v187
  %v368 = vpop.f32.mrf.mxu0
  %v369 = vadd.f32 %v128, %v368
  %v370 = vpop.f32.mrf.mxu0
  %371 = vmatprep.mubr.f32.mxu0 0.0
  %372 = vmatmul.mubr.f32.gmra.mxu0 %v190
  %v373 = vpop.f32.mrf.mxu0
  %v374 = vadd.f32 %v133, %v373
  %v375 = vpop.f32.mrf.mxu0
  %376 = vmatprep.mubr.f32.mxu0 0.0
  %377 = vmatmul.mubr.f32.gmra.mxu0 %v193
  %v378 = vpop.f32.mrf.mxu0
  %v379 = vadd.f32 %v138, %v378
  %v380 = vpop.f32.mrf.mxu0
  %381 = vmatprep.mubr.f32.mxu0 0.0
  %382 = vmatmul.mubr.f32.gmra.mxu0 %v196
  %v383 = vpop.f32.mrf.mxu0
  %v384 = vadd.f32 %v143, %v383
  %v385 = vpop.f32.mrf.mxu0
  %386 = vmatprep.mubr.f32.mxu0 0.0
  %387 = vmatmul.mubr.f32.gmra.mxu0 %v199
  %v388 = vpop.f32.mrf.mxu0
  %v389 = vadd.f32 %v148, %v388
  %v390 = vpop.f32.mrf.mxu0
  %391 = vmatprep.mubr.f32.mxu0 0.0
  %392 = vmatmul.mubr.f32.gmra.mxu0 %v202
  %v393 = vpop.f32.mrf.mxu0
  %v394 = vadd.f32 %v153, %v393
  %v395 = vpop.f32.mrf.mxu0
  %396 = vdwg.mxu0
  %v397 = vmax.f32 %v319, 0.0
  %v398 = vmax.f32 %v324, 0.0
  %v399 = vmax.f32 %v329, 0.0
  %v400 = vmax.f32 %v334, 0.0
  %v401 = vmax.f32 %v339, 0.0
  %v402 = vmax.f32 %v344, 0.0
  %v403 = vmax.f32 %v349, 0.0
  %v404 = vmax.f32 %v354, 0.0
  %v405 = vmax.f32 %v359, 0.0
  %v406 = vmax.f32 %v364, 0.0
  %v407 = vmax.f32 %v369, 0.0
  %v408 = vmax.f32 %v374, 0.0
  %v409 = vmax.f32 %v379, 0.0
  %v410 = vmax.f32 %v384, 0.0
  %v411 = vmax.f32 %v389, 0.0
  %v412 = vmax.f32 %v394, 0.0
  %v413 = vld [vmem:[%s3] sm:$0xff]
  %v414 = vld [vmem:[%s3 + $0x8] sm:$0xff]
  %v415 = vld [vmem:[%s3 + $0x10] sm:$0xff]
  %v416 = vld [vmem:[%s3 + $0x18] sm:$0xff]
  %v417 = vld [vmem:[%s3 + $0x20] sm:$0xff]
  %v418 = vld [vmem:[%s3 + $0x28] sm:$0xff]
  %v419 = vld [vmem:[%s3 + $0x30] sm:$0xff]
  %v420 = vld [vmem:[%s3 + $0x38] sm:$0xff]
  %v421 = vld [vmem:[%s3 + $0x40] sm:$0xff]
  %v422 = vld [vmem:[%s3 + $0x48] sm:$0xff]
  %v423 = vld [vmem:[%s3 + $0x50] sm:$0xff]
  %v424 = vld [vmem:[%s3 + $0x58] sm:$0xff]
  %v425 = vld [vmem:[%s3 + $0x60] sm:$0xff]
  %v426 = vld [vmem:[%s3 + $0x68] sm:$0xff]
  %v427 = vld [vmem:[%s3 + $0x70] sm:$0xff]
  %v428 = vld [vmem:[%s3 + $0x78] sm:$0xff]
  %v429 = vld [vmem:[%s4] sm:$0xff]
  %v430 = vld [vmem:[%s4 + $0x8] sm:$0xff]
  %v431 = vld [vmem:[%s4 + $0x10] sm:$0xff]
  %v432 = vld [vmem:[%s4 + $0x18] sm:$0xff]
  %v433 = vld [vmem:[%s4 + $0x20] sm:$0xff]
  %v434 = vld [vmem:[%s4 + $0x28] sm:$0xff]
  %v435 = vld [vmem:[%s4 + $0x30] sm:$0xff]
  %v436 = vld [vmem:[%s4 + $0x38] sm:$0xff]
  %v437 = vld [vmem:[%s4 + $0x40] sm:$0xff]
  %v438 = vld [vmem:[%s4 + $0x48] sm:$0xff]
  %v439 = vld [vmem:[%s4 + $0x50] sm:$0xff]
  %v440 = vld [vmem:[%s4 + $0x58] sm:$0xff]
  %v441 = vld [vmem:[%s4 + $0x60] sm:$0xff]
  %v442 = vld [vmem:[%s4 + $0x68] sm:$0xff]
  %v443 = vld [vmem:[%s4 + $0x70] sm:$0xff]
  %v444 = vld [vmem:[%s4 + $0x78] sm:$0xff]
  %446 = vset.pattern.permute.xlu0 0
  %447 = vperm.xlu0 %446, %v429
  %v448 = vpop.permute.xlu0 %447
  %451 = vset.pattern.permute.xlu0 0
  %452 = vperm.xlu0 %451, %v430
  %v453 = vpop.permute.xlu0 %452
  %456 = vset.pattern.permute.xlu0 0
  %457 = vperm.xlu0 %456, %v431
  %v458 = vpop.permute.xlu0 %457
  %461 = vset.pattern.permute.xlu0 0
  %462 = vperm.xlu0 %461, %v432
  %v463 = vpop.permute.xlu0 %462
  %466 = vset.pattern.permute.xlu0 0
  %467 = vperm.xlu0 %466, %v433
  %v468 = vpop.permute.xlu0 %467
  %471 = vset.pattern.permute.xlu0 0
  %472 = vperm.xlu0 %471, %v434
  %v473 = vpop.permute.xlu0 %472
  %476 = vset.pattern.permute.xlu0 0
  %477 = vperm.xlu0 %476, %v435
  %v478 = vpop.permute.xlu0 %477
  %481 = vset.pattern.permute.xlu0 0
  %482 = vperm.xlu0 %481, %v436
  %v483 = vpop.permute.xlu0 %482
  %486 = vset.pattern.permute.xlu0 0
  %487 = vperm.xlu0 %486, %v437
  %v488 = vpop.permute.xlu0 %487
  %491 = vset.pattern.permute.xlu0 0
  %492 = vperm.xlu0 %491, %v438
  %v493 = vpop.permute.xlu0 %492
  %496 = vset.pattern.permute.xlu0 0
  %497 = vperm.xlu0 %496, %v439
  %v498 = vpop.permute.xlu0 %497
  %501 = vset.pattern.permute.xlu0 0
  %502 = vperm.xlu0 %501, %v440
  %v503 = vpop.permute.xlu0 %502
  %506 = vset.pattern.permute.xlu0 0
  %507 = vperm.xlu0 %506, %v441
  %v508 = vpop.permute.xlu0 %507
  %511 = vset.pattern.permute.xlu0 0
  %512 = vperm.xlu0 %511, %v442
  %v513 = vpop.permute.xlu0 %512
  %516 = vset.pattern.permute.xlu0 0
  %517 = vperm.xlu0 %516, %v443
  %v518 = vpop.permute.xlu0 %517
  %521 = vset.pattern.permute.xlu0 0
  %522 = vperm.xlu0 %521, %v444
  %v523 = vpop.permute.xlu0 %522
  %525 = vmatprep.subr.mxu0 0.0
  %526 = vmatpush1.msra.mxu0 %v412
  %527 = vmatprep.subr.mxu0 0.0
  %528 = vmatpush1.msra.mxu0 %v411
  %529 = vmatprep.subr.mxu0 0.0
  %530 = vmatpush1.msra.mxu0 %v410
  %531 = vmatprep.subr.mxu0 0.0
  %532 = vmatpush1.msra.mxu0 %v409
  %533 = vmatprep.subr.mxu0 0.0
  %534 = vmatpush1.msra.mxu0 %v408
  %535 = vmatprep.subr.mxu0 0.0
  %536 = vmatpush1.msra.mxu0 %v407
  %537 = vmatprep.subr.mxu0 0.0
  %538 = vmatpush1.msra.mxu0 %v406
  %539 = vmatprep.subr.mxu0 0.0
  %540 = vmatpush1.msra.mxu0 %v405
  %541 = vmatprep.subr.mxu0 0.0
  %542 = vmatpush1.msra.mxu0 %v404
  %543 = vmatprep.subr.mxu0 0.0
  %544 = vmatpush1.msra.mxu0 %v403
  %545 = vmatprep.subr.mxu0 0.0
  %546 = vmatpush1.msra.mxu0 %v402
  %547 = vmatprep.subr.mxu0 0.0
  %548 = vmatpush1.msra.mxu0 %v401
  %549 = vmatprep.subr.mxu0 0.0
  %550 = vmatpush1.msra.mxu0 %v400
  %551 = vmatprep.subr.mxu0 0.0
  %552 = vmatpush1.msra.mxu0 %v399
  %553 = vmatprep.subr.mxu0 0.0
  %554 = vmatpush1.msra.mxu0 %v398
  %555 = vmatprep.subr.mxu0 0.0
  %556 = vmatpush1.msra.mxu0 %v397
  %557 = vmatprep.subr.mxu0 0.0
  %558 = vmatpush2.msra.mxu0 0.0
  %559 = vmatprep.subr.mxu0 0.0
  %560 = vmatpush2.msra.mxu0 0.0
  %561 = vmatprep.subr.mxu0 0.0
  %562 = vmatpush2.msra.mxu0 0.0
  %563 = vmatprep.subr.mxu0 0.0
  %564 = vmatpush2.msra.mxu0 0.0
  %565 = vmatprep.subr.mxu0 0.0
  %566 = vmatpush2.msra.mxu0 0.0
  %567 = vmatprep.subr.mxu0 0.0
  %568 = vmatpush2.msra.mxu0 0.0
  %569 = vmatprep.subr.mxu0 0.0
  %570 = vmatpush2.msra.mxu0 0.0
  %571 = vmatprep.subr.mxu0 0.0
  %572 = vmatpush2.msra.mxu0 0.0
  %573 = vmatprep.subr.mxu0 0.0
  %574 = vmatpush2.msra.mxu0 0.0
  %575 = vmatprep.subr.mxu0 0.0
  %576 = vmatpush2.msra.mxu0 0.0
  %577 = vmatprep.subr.mxu0 0.0
  %578 = vmatpush2.msra.mxu0 0.0
  %579 = vmatprep.subr.mxu0 0.0
  %580 = vmatpush2.msra.mxu0 0.0
  %581 = vmatprep.subr.mxu0 0.0
  %582 = vmatpush2.msra.mxu0 0.0
  %583 = vmatprep.subr.mxu0 0.0
  %584 = vmatpush2.msra.mxu0 0.0
  %585 = vmatprep.subr.mxu0 0.0
  %586 = vmatpush2.msra.mxu0 0.0
  %587 = vmatprep.subr.mxu0 0.0
  %588 = vmatpush2.msra.mxu0 0.0
  %589 = vmatprep.mubr.f32.mxu0 0.0
  %590 = vmatmul.mubr.f32.gmra.mxu0 %v413
  %v591 = vpop.f32.mrf.mxu0
  %v592 = vadd.f32 %v448, %v591
  %v593 = vpop.f32.mrf.mxu0
  %594 = vmatprep.mubr.f32.mxu0 0.0
  %595 = vmatmul.mubr.f32.gmra.mxu0 %v414
  %v596 = vpop.f32.mrf.mxu0
  %v597 = vadd.f32 %v453, %v596
  %v598 = vpop.f32.mrf.mxu0
  %599 = vmatprep.mubr.f32.mxu0 0.0
  %600 = vmatmul.mubr.f32.gmra.mxu0 %v415
  %v601 = vpop.f32.mrf.mxu0
  %v602 = vadd.f32 %v458, %v601
  %v603 = vpop.f32.mrf.mxu0
  %604 = vmatprep.mubr.f32.mxu0 0.0
  %605 = vmatmul.mubr.f32.gmra.mxu0 %v416
  %v606 = vpop.f32.mrf.mxu0
  %v607 = vadd.f32 %v463, %v606
  %v608 = vpop.f32.mrf.mxu0
  %609 = vmatprep.mubr.f32.mxu0 0.0
  %610 = vmatmul.mubr.f32.gmra.mxu0 %v417
  %v611 = vpop.f32.mrf.mxu0
  %v612 = vadd.f32 %v468, %v611
  %v613 = vpop.f32.mrf.mxu0
  %614 = vmatprep.mubr.f32.mxu0 0.0
  %615 = vmatmul.mubr.f32.gmra.mxu0 %v418
  %v616 = vpop.f32.mrf.mxu0
  %v617 = vadd.f32 %v473, %v616
  %v618 = vpop.f32.mrf.mxu0
  %619 = vmatprep.mubr.f32.mxu0 0.0
  %620 = vmatmul.mubr.f32.gmra.mxu0 %v419
  %v621 = vpop.f32.mrf.mxu0
  %v622 = vadd.f32 %v478, %v621
  %v623 = vpop.f32.mrf.mxu0
  %624 = vmatprep.mubr.f32.mxu0 0.0
  %625 = vmatmul.mubr.f32.gmra.mxu0 %v420
  %v626 = vpop.f32.mrf.mxu0
  %v627 = vadd.f32 %v483, %v626
  %v628 = vpop.f32.mrf.mxu0
  %629 = vmatprep.mubr.f32.mxu0 0.0
  %630 = vmatmul.mubr.f32.gmra.mxu0 %v421
  %v631 = vpop.f32.mrf.mxu0
  %v632 = vadd.f32 %v488, %v631
  %v633 = vpop.f32.mrf.mxu0
  %634 = vmatprep.mubr.f32.mxu0 0.0
  %635 = vmatmul.mubr.f32.gmra.mxu0 %v422
  %v636 = vpop.f32.mrf.mxu0
  %v637 = vadd.f32 %v493, %v636
  %v638 = vpop.f32.mrf.mxu0
  %639 = vmatprep.mubr.f32.mxu0 0.0
  %640 = vmatmul.mubr.f32.gmra.mxu0 %v423
  %v641 = vpop.f32.mrf.mxu0
  %v642 = vadd.f32 %v498, %v641
  %v643 = vpop.f32.mrf.mxu0
  %644 = vmatprep.mubr.f32.mxu0 0.0
  %645 = vmatmul.mubr.f32.gmra.mxu0 %v424
  %v646 = vpop.f32.mrf.mxu0
  %v647 = vadd.f32 %v503, %v646
  %v648 = vpop.f32.mrf.mxu0
  %649 = vmatprep.mubr.f32.mxu0 0.0
  %650 = vmatmul.mubr.f32.gmra.mxu0 %v425
  %v651 = vpop.f32.mrf.mxu0
  %v652 = vadd.f32 %v508, %v651
  %v653 = vpop.f32.mrf.mxu0
  %654 = vmatprep.mubr.f32.mxu0 0.0
  %655 = vmatmul.mubr.f32.gmra.mxu0 %v426
  %v656 = vpop.f32.mrf.mxu0
  %v657 = vadd.f32 %v513, %v656
  %v658 = vpop.f32.mrf.mxu0
  %659 = vmatprep.mubr.f32.mxu0 0.0
  %660 = vmatmul.mubr.f32.gmra.mxu0 %v427
  %v661 = vpop.f32.mrf.mxu0
  %v662 = vadd.f32 %v518, %v661
  %v663 = vpop.f32.mrf.mxu0
  %664 = vmatprep.mubr.f32.mxu0 0.0
  %665 = vmatmul.mubr.f32.gmra.mxu0 %v428
  %v666 = vpop.f32.mrf.mxu0
  %v667 = vadd.f32 %v523, %v666
  %v668 = vpop.f32.mrf.mxu0
  %669 = vdwg.mxu0
  %v670 = vmax.f32 %v592, 0.0
  %v671 = vmax.f32 %v597, 0.0
  %v672 = vmax.f32 %v602, 0.0
  %v673 = vmax.f32 %v607, 0.0
  %v674 = vmax.f32 %v612, 0.0
  %v675 = vmax.f32 %v617, 0.0
  %v676 = vmax.f32 %v622, 0.0
  %v677 = vmax.f32 %v627, 0.0
  %v678 = vmax.f32 %v632, 0.0
  %v679 = vmax.f32 %v637, 0.0
  %v680 = vmax.f32 %v642, 0.0
  %v681 = vmax.f32 %v647, 0.0
  %v682 = vmax.f32 %v652, 0.0
  %v683 = vmax.f32 %v657, 0.0
  %v684 = vmax.f32 %v662, 0.0
  %v685 = vmax.f32 %v667, 0.0
  %v686 = vld [vmem:[%s5] sm:$0xff]
  %v687 = vld [vmem:[%s5 + $0x8] sm:$0xff]
  %v688 = vld [vmem:[%s5 + $0x10] sm:$0xff]
  %v689 = vld [vmem:[%s5 + $0x18] sm:$0xff]
  %v690 = vld [vmem:[%s5 + $0x20] sm:$0xff]
  %v691 = vld [vmem:[%s5 + $0x28] sm:$0xff]
  %v692 = vld [vmem:[%s5 + $0x30] sm:$0xff]
  %v693 = vld [vmem:[%s5 + $0x38] sm:$0xff]
  %v694 = vld [vmem:[%s5 + $0x40] sm:$0xff]
  %v695 = vld [vmem:[%s5 + $0x48] sm:$0xff]
  %v696 = vld [vmem:[%s5 + $0x50] sm:$0xff]
  %v697 = vld [vmem:[%s5 + $0x58] sm:$0xff]
  %v698 = vld [vmem:[%s5 + $0x60] sm:$0xff]
  %v699 = vld [vmem:[%s5 + $0x68] sm:$0xff]
  %v700 = vld [vmem:[%s5 + $0x70] sm:$0xff]
  %v701 = vld [vmem:[%s5 + $0x78] sm:$0xff]
  %703 = vset.pattern.permute.xlu0 0
  %704 = vperm.xlu0 %703, %v686
  %v705 = vpop.permute.xlu0 %704
  %708 = vset.pattern.permute.xlu0 0
  %709 = vperm.xlu0 %708, %v687
  %v710 = vpop.permute.xlu0 %709
  %713 = vset.pattern.permute.xlu0 0
  %714 = vperm.xlu0 %713, %v688
  %v715 = vpop.permute.xlu0 %714
  %718 = vset.pattern.permute.xlu0 0
  %719 = vperm.xlu0 %718, %v689
  %v720 = vpop.permute.xlu0 %719
  %723 = vset.pattern.permute.xlu0 0
  %724 = vperm.xlu0 %723, %v690
  %v725 = vpop.permute.xlu0 %724
  %728 = vset.pattern.permute.xlu0 0
  %729 = vperm.xlu0 %728, %v691
  %v730 = vpop.permute.xlu0 %729
  %733 = vset.pattern.permute.xlu0 0
  %734 = vperm.xlu0 %733, %v692
  %v735 = vpop.permute.xlu0 %734
  %738 = vset.pattern.permute.xlu0 0
  %739 = vperm.xlu0 %738, %v693
  %v740 = vpop.permute.xlu0 %739
  %743 = vset.pattern.permute.xlu0 0
  %744 = vperm.xlu0 %743, %v694
  %v745 = vpop.permute.xlu0 %744
  %748 = vset.pattern.permute.xlu0 0
  %749 = vperm.xlu0 %748, %v695
  %v750 = vpop.permute.xlu0 %749
  %753 = vset.pattern.permute.xlu0 0
  %754 = vperm.xlu0 %753, %v696
  %v755 = vpop.permute.xlu0 %754
  %758 = vset.pattern.permute.xlu0 0
  %759 = vperm.xlu0 %758, %v697
  %v760 = vpop.permute.xlu0 %759
  %763 = vset.pattern.permute.xlu0 0
  %764 = vperm.xlu0 %763, %v698
  %v765 = vpop.permute.xlu0 %764
  %768 = vset.pattern.permute.xlu0 0
  %769 = vperm.xlu0 %768, %v699
  %v770 = vpop.permute.xlu0 %769
  %773 = vset.pattern.permute.xlu0 0
  %774 = vperm.xlu0 %773, %v700
  %v775 = vpop.permute.xlu0 %774
  %778 = vset.pattern.permute.xlu0 0
  %779 = vperm.xlu0 %778, %v701
  %v780 = vpop.permute.xlu0 %779
  %v782 = vmul.f32 %v670, %v705
  %v783 = vmul.f32 %v671, %v710
  %v784 = vmul.f32 %v672, %v715
  %v785 = vmul.f32 %v673, %v720
  %v786 = vmul.f32 %v674, %v725
  %v787 = vmul.f32 %v675, %v730
  %v788 = vmul.f32 %v676, %v735
  %v789 = vmul.f32 %v677, %v740
  %v790 = vmul.f32 %v678, %v745
  %v791 = vmul.f32 %v679, %v750
  %v792 = vmul.f32 %v680, %v755
  %v793 = vmul.f32 %v681, %v760
  %v794 = vmul.f32 %v682, %v765
  %v795 = vmul.f32 %v683, %v770
  %v796 = vmul.f32 %v684, %v775
  %v797 = vmul.f32 %v685, %v780
  %v798 = vadd.f32 %v782, %v783
  %v799 = vadd.f32 %v798, %v784
  %v800 = vadd.f32 %v799, %v785
  %v801 = vadd.f32 %v800, %v786
  %v802 = vadd.f32 %v801, %v787
  %v803 = vadd.f32 %v802, %v788
  %v804 = vadd.f32 %v803, %v789
  %v805 = vadd.f32 %v804, %v790
  %v806 = vadd.f32 %v805, %v791
  %v807 = vadd.f32 %v806, %v792
  %v808 = vadd.f32 %v807, %v793
  %v809 = vadd.f32 %v808, %v794
  %v810 = vadd.f32 %v809, %v795
  %v811 = vadd.f32 %v810, %v796
  %v812 = vadd.f32 %v811, %v797
  %v813 = vrot.slane %v812, 4
  %v814 = vadd.f32 %v812, %v813
  %v815 = vrot.slane %v814, 2
  %v816 = vadd.f32 %v814, %v815
  %v817 = vrot.slane %v816, 1
  %v818 = vadd.f32 %v816, %v817
  %s819 = sld [smem:[#allocation2]]
  %v820 = vstv %s819
  %v821 = vadd.f32 %v818, %v820
  %822 = vst [vmem:[%s7] sm:$0x1] %v821
  // Predicated region
  $region30: #{qvalue_forward.1} parent=0 // pred_check
    _
  $region31: #{qvalue_forward.1} parent=0 // pred_check_branch
    %824 = sbr.rel (0) target = $region33
  $region32: #{qvalue_forward.1} parent=0 // pred_region
    _
  $region33: #{qvalue_forward.1} parent=0 // pred_fallthru
    _
  // Predicated region
  $region34: #{qvalue_forward.1} parent=0 // pred_check
    _
  $region35: #{qvalue_forward.1} parent=0 // pred_check_branch
    %826 = sbr.rel (0) target = $region37
  $region36: #{qvalue_forward.1} parent=0 // pred_region
    _
  $region37: #{qvalue_forward.1} parent=0 // pred_fallthru
    _

</llo_original>
